<compile_context>
chip_gen: v7x
topology: tpu7x:2x2x1
jax: 0.10.0
libtpu: 0.0.40
codegen_flags: <defaults>
</compile_context>

<pallas_src>
import math

import jax
import jax.numpy as jnp
import numpy as np
from jax.experimental import pallas as pl
from jax.experimental.pallas import tpu as pltpu

# ---------------- small, module-consistent config ----------------
B = 2          # batch
N = 8          # sequence length
HIDDEN = 32    # config.hidden_size
H = 2          # config.num_attention_heads
D = 16         # config.dim_attention_head
INTER = 64     # config.intermediate_size
SCALE_BASE = 512

BN = B * N                                      # 16 (all tokens of all batches)
INNER = H * D                                   # 32
SPLIT = (INNER, D, D, 2 * INTER)                # (32, 16, 16, 128)
SUM_SPLIT = sum(SPLIT)                          # 192
SLAB = HIDDEN + H * BN                          # 64  (block out + per-head scores)
ATTN_SCALE = 1.0 / math.sqrt(D)
LN_EPS = 1e-5
NEG_MAX = float(np.finfo(np.float32).max)


# ---------------- Pallas kernel (single step: whole batch at once) ----------------
def palm_block_kernel(x_ref, gamma_ref, w_fused_ref, w_attn_ref, w_o_ref,
                      rot_q_ref, rot_k_ref, bias_ref, out_ref):
    x = x_ref[...]                                            # (BN, HIDDEN) f32

    # --- LayerNorm (gamma param, beta buffer == 0) ---
    mean = jnp.mean(x, axis=-1, keepdims=True)
    var = jnp.mean((x - mean) ** 2, axis=-1, keepdims=True)
    xn = (x - mean) * jax.lax.rsqrt(var + LN_EPS) * gamma_ref[...]

    # --- fused q/k/v/ff projection: one (16,32)@(32,192) MXU dot ---
    proj = jnp.dot(xn, w_fused_ref[...], preferred_element_type=jnp.float32)  # (BN, 192)
    q = proj[:, :INNER] * rot_q_ref[...]                      # (BN, H*D)  "rotary" coeff
    k = proj[:, INNER:INNER + D] * rot_k_ref[...]             # (BN, D)  single kv head
    v = proj[:, INNER + D:INNER + 2 * D]                      # (BN, D)
    ff = proj[:, INNER + 2 * D:]                              # (BN, 2*INTER)

    # --- stack heads along sublanes: rows ordered (h, b, n) ---
    q_rows = jnp.concatenate([q[:, h * D:(h + 1) * D] for h in range(H)], axis=0)  # (H*BN, D)

    # --- one score matmul for both heads / both batch elems; contract last dims
    #     (no .T materialization) ---
    s = jax.lax.dot_general(q_rows, k, (((1,), (1,)), ((), ())),
                            preferred_element_type=jnp.float32)                    # (H*BN, BN)
    # host-precomputed causal + key-padding + cross-batch mask as additive bias
    # (0 where kept, -float32.max where masked; adding ~0.05 to -3.4e38 rounds
    #  back to -3.4e38, so this matches masked_fill exactly after exp()).
    s = s * ATTN_SCALE + bias_ref[...]
    s = s - jnp.max(s, axis=-1, keepdims=True)
    e = jnp.exp(s)
    p = e * pl.reciprocal(jnp.sum(e, axis=-1, keepdims=True), approx=True)          # softmax

    # --- one P @ V matmul, then regroup heads along lanes for attn_out ---
    o = jnp.dot(p, v, preferred_element_type=jnp.float32)                           # (H*BN, D)
    out_cat = jnp.concatenate([o[h * BN:(h + 1) * BN] for h in range(H)], axis=-1)  # (BN, H*D)
    attn_out = jnp.dot(out_cat, w_attn_ref[...], preferred_element_type=jnp.float32)

    # --- SwiGLU feed-forward ---
    x_ff = ff[:, :INTER]
    gate = ff[:, INTER:]
    ff_out = jnp.dot(jax.nn.silu(gate) * x_ff, w_o_ref[...],
                     preferred_element_type=jnp.float32)

    y = attn_out + ff_out                                     # (BN, HIDDEN)

    # --- single lane-denser output slab: [block out | scores head0 | scores head1] ---
    out_ref[...] = jnp.concatenate(
        [y] + [p[h * BN:(h + 1) * BN] for h in range(H)], axis=-1)   # (BN, SLAB)


# ---------------- host-side helpers (glue) ----------------
def build_mask_bias(mask):
    """Additive bias (H*BN, BN): 0 where key kept (same batch, causal, unmasked),
    -float32.max otherwise (also masks cross-batch columns of the collapsed layout)."""
    pos = jnp.arange(BN)
    b_of = pos // N
    n_of = pos % N
    same_b = b_of[:, None] == b_of[None, :]
    causal = n_of[None, :] <= n_of[:, None]
    key_keep = (mask.reshape(-1) != 0)[None, :]
    keep = same_b & causal & key_keep                         # (BN, BN)
    bias = jnp.where(keep, 0.0, -NEG_MAX).astype(jnp.float32)
    return jnp.tile(bias, (H, 1))                             # (H*BN, BN), rows (h, b, i)


def palm_block_pallas(x, mask, gamma, w_fused, w_attn, w_o, rot_q, rot_k):
    x_flat = x.reshape(BN, HIDDEN)
    gamma2 = gamma.reshape(1, HIDDEN)
    rot_q_rows = jnp.tile(jnp.tile(rot_q, (1, H)), (B, 1))    # (BN, H*D)
    rot_k_rows = jnp.tile(rot_k, (B, 1))                      # (BN, D)
    bias = build_mask_bias(mask)                              # (H*BN, BN)

    # NOTE: on v7x one could use grid=(B,) + dimension_semantics=("parallel",)
    # to put one batch element per TensorCore; here the grid is collapsed to a
    # single step, which is the right call on single-TC v5e/v6e.
    grid_spec = pltpu.PrefetchScalarGridSpec(
        num_scalar_prefetch=0,
        grid=(1,),
        in_specs=[
            pl.BlockSpec((BN, HIDDEN), lambda i: (0, 0)),        # x (flattened batch)
            pl.BlockSpec((1, HIDDEN), lambda i: (0, 0)),         # gamma
            pl.BlockSpec((HIDDEN, SUM_SPLIT), lambda i: (0, 0)), # fused proj W
            pl.BlockSpec((INNER, HIDDEN), lambda i: (0, 0)),     # attn_out W
            pl.BlockSpec((INTER, HIDDEN), lambda i: (0, 0)),     # o_proj W
            pl.BlockSpec((BN, INNER), lambda i: (0, 0)),         # rotary coeff (q), tiled
            pl.BlockSpec((BN, D), lambda i: (0, 0)),             # rotary coeff (k), tiled
            pl.BlockSpec((H * BN, BN), lambda i: (0, 0)),        # combined mask bias
        ],
        out_specs=pl.BlockSpec((BN, SLAB), lambda i: (0, 0)),
    )
    slab = pl.pallas_call(
        palm_block_kernel,
        out_shape=jax.ShapeDtypeStruct((BN, SLAB), jnp.float32),
        grid_spec=grid_spec,
        compiler_params=pltpu.CompilerParams(dimension_semantics=("arbitrary",)),
    )(x_flat, gamma2, w_fused, w_attn, w_o, rot_q_rows, rot_k_rows, bias)

    # host-side layout plumbing (free XLA ops)
    out = slab[:, :HIDDEN].reshape(B, N, HIDDEN)
    s6 = slab[:, HIDDEN:].reshape(B, N, H, B, N)              # [b, i, h, b', j]
    scores = jnp.stack([s6[b, :, :, b, :] for b in range(B)], axis=0)  # (B, N, H, N)
    scores = scores.transpose(0, 2, 1, 3)                     # (B, H, N, N)
    return out, scores


def rotary_coeffs(n, d, scale_base):
    """Coefficients replicating apply_rotary_pos_emb with the rotate_half quirk."""
    inv_freq = 1.0 / (10000.0 ** (jnp.arange(0, d, 2, dtype=jnp.float32) / d))  # (d/2,)
    t = jnp.arange(n, dtype=jnp.float32)
    freqs = t[:, None] * inv_freq[None, :]                    # (n, d/2)
    freqs = jnp.concatenate([freqs, freqs], axis=-1)          # (n, d)
    power = (t - n // 2) / scale_base                         # (n,)
    scale_vec = (jnp.arange(0, d, 2, dtype=jnp.float32) + 0.4 * d) / (1.4 * d)
    scale = scale_vec[None, :] ** power[:, None]              # (n, d/2)
    scale = jnp.concatenate([scale, scale], axis=-1)          # (n, d)
    cs = jnp.cos(freqs) + jnp.sin(freqs)
    return cs * scale, cs * (scale ** -1.0)                   # (rot_q, rot_k)


def palm_block_ref(x, mask, gamma, w_fused, w_attn, w_o, rot_q, rot_k):
    """Pure-JAX reference mirroring the PyTorch forward."""
    mean = x.mean(-1, keepdims=True)
    var = ((x - mean) ** 2).mean(-1, keepdims=True)
    xn = (x - mean) / jnp.sqrt(var + LN_EPS) * gamma
    proj = xn @ w_fused
    q = proj[..., :INNER]
    k = proj[..., INNER:INNER + D]
    v = proj[..., INNER + D:INNER + 2 * D]
    ff = proj[..., INNER + 2 * D:]
    q = q.reshape(B, N, H, D).transpose(0, 2, 1, 3)           # b h n d
    q = q * rot_q
    k = k * rot_k
    s = jnp.einsum('bhid,bjd->bhij', q, k) * ATTN_SCALE
    causal = jnp.arange(N)[None, :] <= jnp.arange(N)[:, None]
    keep = causal[None, None] & (mask[:, None, None, :] != 0)
    s = jnp.where(keep, s, -NEG_MAX)
    attn = jax.nn.softmax(s, axis=-1)
    out = jnp.einsum('bhij,bjd->bhid', attn, v)
    out = out.transpose(0, 2, 1, 3).reshape(B, N, H * D)
    attn_out = out @ w_attn
    x_ff, gate = ff[..., :INTER], ff[..., INTER:]
    ff_out = (jax.nn.silu(gate) * x_ff) @ w_o
    return attn_out + ff_out, attn


if __name__ == "__main__":
    key = jax.random.PRNGKey(0)
    k_x, k_f, k_a, k_o = jax.random.split(key, 4)

    x = jax.random.normal(k_x, (B, N, HIDDEN), dtype=jnp.float32)
    mask = jnp.ones((B, N), dtype=jnp.int32)                  # key padding mask (all valid)

    gamma = jnp.ones((HIDDEN,), dtype=jnp.float32)            # LayerNorm gamma init
    w_fused = 0.02 * jax.random.normal(k_f, (HIDDEN, SUM_SPLIT), dtype=jnp.float32)
    w_attn = 0.02 * jax.random.normal(k_a, (INNER, HIDDEN), dtype=jnp.float32)
    w_o = 0.02 * jax.random.normal(k_o, (INTER, HIDDEN), dtype=jnp.float32)

    rot_q, rot_k = rotary_coeffs(N, D, SCALE_BASE)

    out, score = palm_block_pallas(x, mask, gamma, w_fused, w_attn, w_o, rot_q, rot_k)
    out, score = jax.block_until_ready((out, score))

    ref_out, ref_score = palm_block_ref(x, mask, gamma, w_fused, w_attn, w_o, rot_q, rot_k)
    np.testing.assert_allclose(np.asarray(out), np.asarray(ref_out), rtol=2e-3, atol=2e-3)
    np.testing.assert_allclose(np.asarray(score), np.asarray(ref_score), rtol=2e-3, atol=2e-3)

    print("KERNEL_OK")
</pallas_src>

<mosaic_0001>
module attributes {stable_mosaic.version = 11 : i64} {
  func.func @palm_block_kernel(%arg0: i32, %arg1: memref<16x32xf32, #tpu.memory_space<vmem>>, %arg2: memref<1x32xf32, #tpu.memory_space<vmem>>, %arg3: memref<32x192xf32, #tpu.memory_space<vmem>>, %arg4: memref<32x32xf32, #tpu.memory_space<vmem>>, %arg5: memref<64x32xf32, #tpu.memory_space<vmem>>, %arg6: memref<16x32xf32, #tpu.memory_space<vmem>>, %arg7: memref<16x16xf32, #tpu.memory_space<vmem>>, %arg8: memref<32x16xf32, #tpu.memory_space<vmem>>, %arg9: memref<16x64xf32, #tpu.memory_space<vmem>>) attributes {dimension_semantics = [#tpu.dimension_semantics<arbitrary>], iteration_bounds = array<i64: 1>, scalar_prefetch = 0 : i64, scratch_operands = 0 : i64, tpu.core_type = #tpu.core_type<tc>, window_params = [{pipeline_mode = #tpu.pipeline_mode<synchronous>, transform_indices = @transform_0, window_bounds = array<i64: 16, 32>}, {pipeline_mode = #tpu.pipeline_mode<synchronous>, transform_indices = @transform_1, window_bounds = array<i64: 1, 32>}, {pipeline_mode = #tpu.pipeline_mode<synchronous>, transform_indices = @transform_2, window_bounds = array<i64: 32, 192>}, {pipeline_mode = #tpu.pipeline_mode<synchronous>, transform_indices = @transform_3, window_bounds = array<i64: 32, 32>}, {pipeline_mode = #tpu.pipeline_mode<synchronous>, transform_indices = @transform_4, window_bounds = array<i64: 64, 32>}, {pipeline_mode = #tpu.pipeline_mode<synchronous>, transform_indices = @transform_5, window_bounds = array<i64: 16, 32>}, {pipeline_mode = #tpu.pipeline_mode<synchronous>, transform_indices = @transform_6, window_bounds = array<i64: 16, 16>}, {pipeline_mode = #tpu.pipeline_mode<synchronous>, transform_indices = @transform_7, window_bounds = array<i64: 32, 16>}, {pipeline_mode = #tpu.pipeline_mode<synchronous>, transform_indices = @transform_8, window_bounds = array<i64: 16, 64>}]} {
    %c0 = arith.constant 0 : index
    %c0_0 = arith.constant 0 : index
    %0 = vector.load %arg1[%c0, %c0_0] : memref<16x32xf32, #tpu.memory_space<vmem>>, vector<16x32xf32>
    %cst = arith.constant dense<0.000000e+00> : vector<16xf32>
    %1 = vector.multi_reduction <add>, %0, %cst [1] : vector<16x32xf32> to vector<16xf32>
    %2 = vector.shape_cast %1 : vector<16xf32> to vector<16x1xf32>
    %cst_1 = arith.constant 3.200000e+01 : f32
    %3 = vector.broadcast %cst_1 : f32 to vector<16x1xf32>
    %4 = arith.divf %2, %3 : vector<16x1xf32>
    %5 = vector.broadcast %4 : vector<16x1xf32> to vector<16x32xf32>
    %6 = arith.subf %0, %5 : vector<16x32xf32>
    %7 = arith.mulf %6, %6 : vector<16x32xf32>
    %cst_2 = arith.constant dense<0.000000e+00> : vector<16xf32>
    %8 = vector.multi_reduction <add>, %7, %cst_2 [1] : vector<16x32xf32> to vector<16xf32>
    %9 = vector.shape_cast %8 : vector<16xf32> to vector<16x1xf32>
    %cst_3 = arith.constant 3.200000e+01 : f32
    %10 = vector.broadcast %cst_3 : f32 to vector<16x1xf32>
    %11 = arith.divf %9, %10 : vector<16x1xf32>
    %12 = vector.broadcast %4 : vector<16x1xf32> to vector<16x32xf32>
    %13 = arith.subf %0, %12 : vector<16x32xf32>
    %cst_4 = arith.constant 9.99999974E-6 : f32
    %14 = vector.broadcast %cst_4 : f32 to vector<16x1xf32>
    %15 = arith.addf %11, %14 : vector<16x1xf32>
    %16 = math.rsqrt %15 : vector<16x1xf32>
    %17 = vector.broadcast %16 : vector<16x1xf32> to vector<16x32xf32>
    %18 = arith.mulf %13, %17 : vector<16x32xf32>
    %c0_5 = arith.constant 0 : index
    %c0_6 = arith.constant 0 : index
    %19 = vector.load %arg2[%c0_5, %c0_6] : memref<1x32xf32, #tpu.memory_space<vmem>>, vector<1x32xf32>
    %20 = vector.broadcast %19 : vector<1x32xf32> to vector<16x32xf32>
    %21 = arith.mulf %18, %20 : vector<16x32xf32>
    %c0_7 = arith.constant 0 : index
    %c0_8 = arith.constant 0 : index
    %22 = vector.load %arg3[%c0_7, %c0_8] : memref<32x192xf32, #tpu.memory_space<vmem>>, vector<32x192xf32>
    %cst_9 = arith.constant dense<0.000000e+00> : vector<16x192xf32>
    %23 = tpu.matmul %21, %22, %cst_9 {dimension_numbers = #tpu.dot_dimension_numbers<[1], [0], [0], [1], [0, 0, 1, 1], [], []>} : vector<16x32xf32>, vector<32x192xf32>, vector<16x192xf32> -> vector<16x192xf32>
    %24 = vector.extract_strided_slice %23 {offsets = [0, 0], sizes = [16, 32], strides = [1, 1]} : vector<16x192xf32> to vector<16x32xf32>
    %c0_10 = arith.constant 0 : index
    %c0_11 = arith.constant 0 : index
    %25 = vector.load %arg6[%c0_10, %c0_11] : memref<16x32xf32, #tpu.memory_space<vmem>>, vector<16x32xf32>
    %26 = arith.mulf %24, %25 : vector<16x32xf32>
    %27 = vector.extract_strided_slice %23 {offsets = [0, 32], sizes = [16, 16], strides = [1, 1]} : vector<16x192xf32> to vector<16x16xf32>
    %c0_12 = arith.constant 0 : index
    %c0_13 = arith.constant 0 : index
    %28 = vector.load %arg7[%c0_12, %c0_13] : memref<16x16xf32, #tpu.memory_space<vmem>>, vector<16x16xf32>
    %29 = arith.mulf %27, %28 : vector<16x16xf32>
    %30 = vector.extract_strided_slice %23 {offsets = [0, 48], sizes = [16, 16], strides = [1, 1]} : vector<16x192xf32> to vector<16x16xf32>
    %31 = vector.extract_strided_slice %23 {offsets = [0, 64], sizes = [16, 128], strides = [1, 1]} : vector<16x192xf32> to vector<16x128xf32>
    %32 = vector.extract_strided_slice %26 {offsets = [0, 0], sizes = [16, 16], strides = [1, 1]} : vector<16x32xf32> to vector<16x16xf32>
    %33 = vector.extract_strided_slice %26 {offsets = [0, 16], sizes = [16, 16], strides = [1, 1]} : vector<16x32xf32> to vector<16x16xf32>
    %34 = tpu.concatenate %32, %33 in 0 : vector<16x16xf32>, vector<16x16xf32> -> vector<32x16xf32>
    %cst_14 = arith.constant dense<0.000000e+00> : vector<32x16xf32>
    %35 = tpu.matmul %34, %29, %cst_14 {dimension_numbers = #tpu.dot_dimension_numbers<[1], [1], [0], [0], [0, 0, 1, 0], [], []>} : vector<32x16xf32>, vector<16x16xf32>, vector<32x16xf32> -> vector<32x16xf32>
    %cst_15 = arith.constant 2.500000e-01 : f32
    %36 = vector.broadcast %cst_15 : f32 to vector<32x16xf32>
    %37 = arith.mulf %35, %36 : vector<32x16xf32>
    %c0_16 = arith.constant 0 : index
    %c0_17 = arith.constant 0 : index
    %38 = vector.load %arg8[%c0_16, %c0_17] : memref<32x16xf32, #tpu.memory_space<vmem>>, vector<32x16xf32>
    %39 = arith.addf %37, %38 : vector<32x16xf32>
    %cst_18 = arith.constant dense<0xFF800000> : vector<32xf32>
    %40 = vector.multi_reduction <maximumf>, %39, %cst_18 [1] : vector<32x16xf32> to vector<32xf32>
    %41 = vector.shape_cast %40 : vector<32xf32> to vector<32x1xf32>
    %42 = vector.broadcast %41 : vector<32x1xf32> to vector<32x16xf32>
    %43 = arith.subf %39, %42 : vector<32x16xf32>
    %44 = math.exp %43 : vector<32x16xf32>
    %cst_19 = arith.constant dense<0.000000e+00> : vector<32xf32>
    %45 = vector.multi_reduction <add>, %44, %cst_19 [1] : vector<32x16xf32> to vector<32xf32>
    %46 = vector.shape_cast %45 : vector<32xf32> to vector<32x1xf32>
    %47 = tpu.reciprocal %46 {approx = true} : vector<32x1xf32> -> vector<32x1xf32>
    %48 = vector.broadcast %47 : vector<32x1xf32> to vector<32x16xf32>
    %49 = arith.mulf %44, %48 : vector<32x16xf32>
    %cst_20 = arith.constant dense<0.000000e+00> : vector<32x16xf32>
    %50 = tpu.matmul %49, %30, %cst_20 {dimension_numbers = #tpu.dot_dimension_numbers<[1], [0], [0], [1], [0, 0, 1, 1], [], []>} : vector<32x16xf32>, vector<16x16xf32>, vector<32x16xf32> -> vector<32x16xf32>
    %51 = vector.extract_strided_slice %50 {offsets = [0, 0], sizes = [16, 16], strides = [1, 1]} : vector<32x16xf32> to vector<16x16xf32>
    %52 = vector.extract_strided_slice %50 {offsets = [16, 0], sizes = [16, 16], strides = [1, 1]} : vector<32x16xf32> to vector<16x16xf32>
    %53 = tpu.concatenate %51, %52 in 1 : vector<16x16xf32>, vector<16x16xf32> -> vector<16x32xf32>
    %c0_21 = arith.constant 0 : index
    %c0_22 = arith.constant 0 : index
    %54 = vector.load %arg4[%c0_21, %c0_22] : memref<32x32xf32, #tpu.memory_space<vmem>>, vector<32x32xf32>
    %cst_23 = arith.constant dense<0.000000e+00> : vector<16x32xf32>
    %55 = tpu.matmul %53, %54, %cst_23 {dimension_numbers = #tpu.dot_dimension_numbers<[1], [0], [0], [1], [0, 0, 1, 1], [], []>} : vector<16x32xf32>, vector<32x32xf32>, vector<16x32xf32> -> vector<16x32xf32>
    %56 = vector.extract_strided_slice %31 {offsets = [0, 0], sizes = [16, 64], strides = [1, 1]} : vector<16x128xf32> to vector<16x64xf32>
    %57 = vector.extract_strided_slice %31 {offsets = [0, 64], sizes = [16, 64], strides = [1, 1]} : vector<16x128xf32> to vector<16x64xf32>
    %58 = arith.negf %57 : vector<16x64xf32>
    %59 = math.exp %58 : vector<16x64xf32>
    %cst_24 = arith.constant 1.000000e+00 : f32
    %60 = vector.broadcast %cst_24 : f32 to vector<16x64xf32>
    %61 = arith.addf %60, %59 : vector<16x64xf32>
    %62 = arith.divf %60, %61 : vector<16x64xf32>
    %63 = arith.mulf %57, %62 : vector<16x64xf32>
    %64 = arith.mulf %63, %56 : vector<16x64xf32>
    %c0_25 = arith.constant 0 : index
    %c0_26 = arith.constant 0 : index
    %65 = vector.load %arg5[%c0_25, %c0_26] : memref<64x32xf32, #tpu.memory_space<vmem>>, vector<64x32xf32>
    %cst_27 = arith.constant dense<0.000000e+00> : vector<16x32xf32>
    %66 = tpu.matmul %64, %65, %cst_27 {dimension_numbers = #tpu.dot_dimension_numbers<[1], [0], [0], [1], [0, 0, 1, 1], [], []>} : vector<16x64xf32>, vector<64x32xf32>, vector<16x32xf32> -> vector<16x32xf32>
    %67 = arith.addf %55, %66 : vector<16x32xf32>
    %68 = vector.extract_strided_slice %49 {offsets = [0, 0], sizes = [16, 16], strides = [1, 1]} : vector<32x16xf32> to vector<16x16xf32>
    %69 = vector.extract_strided_slice %49 {offsets = [16, 0], sizes = [16, 16], strides = [1, 1]} : vector<32x16xf32> to vector<16x16xf32>
    %70 = tpu.concatenate %67, %68, %69 in 1 : vector<16x32xf32>, vector<16x16xf32>, vector<16x16xf32> -> vector<16x64xf32>
    %c0_28 = arith.constant 0 : index
    %c0_29 = arith.constant 0 : index
    %71 = vector.load %arg9[%c0_28, %c0_29] : memref<16x64xf32, #tpu.memory_space<vmem>>, vector<16x64xf32>
    tpu.vector_store %arg9[%c0_28, %c0_29], %70 {strides = array<i32>} : memref<16x64xf32, #tpu.memory_space<vmem>>, vector<16x64xf32>,
    return
  }
  func.func @transform_0(%arg0: i32) -> (i32, i32) {
    %c0_i32 = arith.constant 0 : i32
    %c0_i32_0 = arith.constant 0 : i32
    %c0_i32_1 = arith.constant 0 : i32
    return %c0_i32, %c0_i32_0 : i32, i32
  }
  func.func @transform_1(%arg0: i32) -> (i32, i32) {
    %c0_i32 = arith.constant 0 : i32
    %c0_i32_0 = arith.constant 0 : i32
    %c0_i32_1 = arith.constant 0 : i32
    return %c0_i32, %c0_i32_0 : i32, i32
  }
  func.func @transform_2(%arg0: i32) -> (i32, i32) {
    %c0_i32 = arith.constant 0 : i32
    %c0_i32_0 = arith.constant 0 : i32
    %c0_i32_1 = arith.constant 0 : i32
    return %c0_i32, %c0_i32_0 : i32, i32
  }
  func.func @transform_3(%arg0: i32) -> (i32, i32) {
    %c0_i32 = arith.constant 0 : i32
    %c0_i32_0 = arith.constant 0 : i32
    %c0_i32_1 = arith.constant 0 : i32
    return %c0_i32, %c0_i32_0 : i32, i32
  }
  func.func @transform_4(%arg0: i32) -> (i32, i32) {
    %c0_i32 = arith.constant 0 : i32
    %c0_i32_0 = arith.constant 0 : i32
    %c0_i32_1 = arith.constant 0 : i32
    return %c0_i32, %c0_i32_0 : i32, i32
  }
  func.func @transform_5(%arg0: i32) -> (i32, i32) {
    %c0_i32 = arith.constant 0 : i32
    %c0_i32_0 = arith.constant 0 : i32
    %c0_i32_1 = arith.constant 0 : i32
    return %c0_i32, %c0_i32_0 : i32, i32
  }
  func.func @transform_6(%arg0: i32) -> (i32, i32) {
    %c0_i32 = arith.constant 0 : i32
    %c0_i32_0 = arith.constant 0 : i32
    %c0_i32_1 = arith.constant 0 : i32
    return %c0_i32, %c0_i32_0 : i32, i32
  }
  func.func @transform_7(%arg0: i32) -> (i32, i32) {
    %c0_i32 = arith.constant 0 : i32
    %c0_i32_0 = arith.constant 0 : i32
    %c0_i32_1 = arith.constant 0 : i32
    return %c0_i32, %c0_i32_0 : i32, i32
  }
  func.func @transform_8(%arg0: i32) -> (i32, i32) {
    %c0_i32 = arith.constant 0 : i32
    %c0_i32_0 = arith.constant 0 : i32
    %c0_i32_1 = arith.constant 0 : i32
    return %c0_i32, %c0_i32_0 : i32, i32
  }
}

</mosaic_0001>

<llo_original>
// kernel: tpu_custom_call.1
$region0: #{tpu_custom_call.1}
  #allocation0 [shape = 'u32[]', space=smem, size = 0x4, offset = 0x4, fixed_abs, tag = 'smem constant byte address 0x4 - core index']
  #allocation1 [shape = 'u32[144,128]{1,0:T(1,128)}', space=vmem, size = 0x12000, scoped, tag = 'internal scratch']
  %s0 = inlined_call_operand.vmem [shape: f32[16,32], index: 0, kind: input, shape index: {}]
  %s1 = inlined_call_operand.vmem [shape: f32[1,32], index: 1, kind: input, shape index: {}]
  %s2 = inlined_call_operand.vmem [shape: f32[32,192], index: 2, kind: input, shape index: {}]
  %s3 = inlined_call_operand.vmem [shape: f32[32,32], index: 3, kind: input, shape index: {}]
  %s4 = inlined_call_operand.vmem [shape: f32[64,32], index: 4, kind: input, shape index: {}]
  %s5 = inlined_call_operand.hbm [shape: f32[16,32], index: 5, kind: input, shape index: {}]
  %s6 = inlined_call_operand.hbm [shape: f32[16,16], index: 6, kind: input, shape index: {}]
  %s7 = inlined_call_operand.vmem [shape: f32[32,16], index: 7, kind: input, shape index: {}]
  %s8 = inlined_call_operand.hbm [shape: f32[16,64], index: 8, kind: output, shape index: {}]
  %s9 = sld [smem:[#allocation0]]
  $region50: #{tpu_custom_call.1} parent=0
    _
  %s11 = ssub.s32 1, %s9
  %s12 = scalar_select 0, %s11, %s9
  $region1: #{tpu_custom_call.1} parent=0
    #allocation2 [shape = 'u8[8192]{0}', space=vmem, size = 0x2000, scoped, tag = 'input window, operand 5, single buffered']
    #allocation3 [shape = 's32[1]{0}', space=sflag, size = 0x4, scoped, tag = 'scoped memory for tpu_custom_call.1']
    #allocation4 [shape = 's32[1]{0}', space=sflag, size = 0x4, scoped, tag = 'scoped memory for tpu_custom_call.1']
    #allocation5 [shape = 'u8[8192]{0}', space=vmem, size = 0x2000, scoped, tag = 'input window, operand 6, single buffered']
    #allocation6 [shape = 's32[1]{0}', space=sflag, size = 0x4, scoped, tag = 'scoped memory for tpu_custom_call.1']
    #allocation7 [shape = 'u8[8192]{0}', space=vmem, size = 0x2000, scoped, tag = 'output window, operand 0, single buffered']
    %13 = vsyncpa [#allocation3], 0
    %14 = vsyncpa [#allocation6], 0
    %15 = vsyncpa [#allocation4], 0
    // Predicated region
    $region2: #{tpu_custom_call.1} parent=1 // pred_check
      _
    $region3: #{tpu_custom_call.1} parent=1 // pred_check_branch
      %17 = sbr.rel (0) target = $region5
    $region4: #{tpu_custom_call.1} parent=1 // pred_region
      _
    $region5: #{tpu_custom_call.1} parent=1 // pred_fallthru
      _
    // Predicated region
    $region6: #{tpu_custom_call.1} parent=1 // pred_check
      _
    $region7: #{tpu_custom_call.1} parent=1 // pred_check_branch
      %19 = sbr.rel (0) target = $region9
    $region8: #{tpu_custom_call.1} parent=1 // pred_region
      _
    $region9: #{tpu_custom_call.1} parent=1 // pred_fallthru
      _
    // Predicated region
    $region10: #{tpu_custom_call.1} parent=1 // pred_check
      _
    $region11: #{tpu_custom_call.1} parent=1 // pred_check_branch
      %21 = sbr.rel (0) target = $region13
    $region12: #{tpu_custom_call.1} parent=1 // pred_region
      _
    $region13: #{tpu_custom_call.1} parent=1 // pred_fallthru
      _
    // Predicated region
    $region14: #{tpu_custom_call.1} parent=1 // pred_check
      _
    $region15: #{tpu_custom_call.1} parent=1 // pred_check_branch
      %23 = sbr.rel (0) target = $region17
    $region16: #{tpu_custom_call.1} parent=1 // pred_region
      _
    $region17: #{tpu_custom_call.1} parent=1 // pred_fallthru
      _
    // Predicated region
    $region18: #{tpu_custom_call.1} parent=1 // pred_check
      _
    $region19: #{tpu_custom_call.1} parent=1 // pred_check_branch
      %25 = sbr.rel (0) target = $region21
    $region20: #{tpu_custom_call.1} parent=1 // pred_region
      _
    $region21: #{tpu_custom_call.1} parent=1 // pred_fallthru
      _
    // Predicated region
    $region22: #{tpu_custom_call.1} parent=1 // pred_check
      _
    $region23: #{tpu_custom_call.1} parent=1 // pred_check_branch
      %27 = sbr.rel (0) target = $region25
    $region24: #{tpu_custom_call.1} parent=1 // pred_region
      %s29 = ssub.s32 256, 256
      %30 = vsyncadd [#allocation3], %s29
      %s31 = sshll.u32 [#allocation2], 4
      %s32 = int_to_ptr.vmem [resolvable:$true] %s31
      %37 = dma.hbm_to_vmem [thread:$0]  %s5, 256, %s32, [#allocation3], 128, 128, 8
    $region25: #{tpu_custom_call.1} parent=1 // pred_fallthru
      _
    // Predicated region
    $region26: #{tpu_custom_call.1} parent=1 // pred_check
      _
    $region27: #{tpu_custom_call.1} parent=1 // pred_check_branch
      %39 = sbr.rel (0) target = $region29
    $region28: #{tpu_custom_call.1} parent=1 // pred_region
      %s41 = ssub.s32 256, 256
      %42 = vsyncadd [#allocation6], %s41
      %s43 = sshll.u32 [#allocation5], 4
      %s44 = int_to_ptr.vmem [resolvable:$true] %s43
      %49 = dma.hbm_to_vmem [thread:$0]  %s6, 256, %s44, [#allocation6], 128, 128, 8
    $region29: #{tpu_custom_call.1} parent=1 // pred_fallthru
      _
    // Predicated region
    $region30: #{tpu_custom_call.1} parent=1 // pred_check
      _
    $region31: #{tpu_custom_call.1} parent=1 // pred_check_branch
      %51 = sbr.rel (0) target = $region33
    $region32: #{tpu_custom_call.1} parent=1 // pred_region
      _
    $region33: #{tpu_custom_call.1} parent=1 // pred_fallthru
      _
    // Predicated region
    $region34: #{tpu_custom_call.1} parent=1 // pred_check
      _
    $region35: #{tpu_custom_call.1} parent=1 // pred_check_branch
      %53 = sbr.rel (0) target = $region37
    $region36: #{tpu_custom_call.1} parent=1 // pred_region
      %54 = dma.done [#allocation3], 256
    $region37: #{tpu_custom_call.1} parent=1 // pred_fallthru
      _
    // Predicated region
    $region38: #{tpu_custom_call.1} parent=1 // pred_check
      _
    $region39: #{tpu_custom_call.1} parent=1 // pred_check_branch
      %56 = sbr.rel (0) target = $region41
    $region40: #{tpu_custom_call.1} parent=1 // pred_region
      %57 = dma.done [#allocation6], 256
    $region41: #{tpu_custom_call.1} parent=1 // pred_fallthru
      _
    %v58 = vld [vmem:[%s0] sm:$0xff]
    %v59 = vld [vmem:[%s0 + $0x8] sm:$0xff]
    %vm60 = vcmask 261120
    %v61 = vsel %vm60, %v58, 0.0
    %62 = vadd.xlane.f32.xlu0 %v61
    %v63 = vpop.xlane.xlu0 %62
    %v64 = vsel %vm60, %v59, 0.0
    %65 = vadd.xlane.f32.xlu0 %v64
    %v66 = vpop.xlane.xlu0 %65
    %v67 = vrcp.pop 32.0
    %v68 = vmul.f32 %v63, %v67
    %v69 = vmul.f32 %v66, %v67
    %v70 = vsub.f32 %v58, %v68
    %v71 = vsub.f32 %v59, %v69
    %v72 = vmul.f32 %v70, %v70
    %v73 = vmul.f32 %v71, %v71
    %v74 = vsel %vm60, %v72, 0.0
    %75 = vadd.xlane.f32.xlu0 %v74
    %v76 = vpop.xlane.xlu0 %75
    %v77 = vsel %vm60, %v73, 0.0
    %78 = vadd.xlane.f32.xlu0 %v77
    %v79 = vpop.xlane.xlu0 %78
    %v80 = vmul.f32 %v76, %v67
    %v81 = vmul.f32 %v79, %v67
    %v82 = vadd.f32 %v80, 1e-05
    %v83 = vadd.f32 %v81, 1e-05
    %v84 = vrsqrt.pop %v82
    %v85 = vrsqrt.pop %v83
    %v86 = vmul.f32 %v70, %v84
    %v87 = vmul.f32 %v71, %v85
    %v88 = vld [vmem:[%s1] sm:$0x1]
    %v90 = vlaneseq
    %v91 = vshrl.u32 %v90, 7
    %v92 = vsub.s32 0, %v91
    %v93 = vrot.slane %v88, %v92
    %v95 = vmul.f32 %v86, %v93
    %v96 = vmul.f32 %v87, %v93
    %v97 = vld [vmem:[%s2] sm:$0xff]
    %v98 = vld [vmem:[%s2 + $0x8] sm:$0xff]
    %v99 = vld [vmem:[%s2 + $0x10] sm:$0xff]
    %v100 = vld [vmem:[%s2 + $0x18] sm:$0xff]
    %v101 = vld [vmem:[%s2 + $0x20] sm:$0xff]
    %v102 = vld [vmem:[%s2 + $0x28] sm:$0xff]
    %v103 = vld [vmem:[%s2 + $0x30] sm:$0xff]
    %v104 = vld [vmem:[%s2 + $0x38] sm:$0xff]
    %v106 = vsel %vm60, %v95, 0
    %v109 = vsel %vm60, %v96, 0
    %111 = vmatprep.subr.mxu0 %v98
    %112 = vmatpush1.msra.mxu0 %v97
    %113 = vmatprep.subr.mxu0 %v100
    %114 = vmatpush1.msra.mxu0 %v99
    %115 = vmatprep.subr.mxu0 %v102
    %116 = vmatpush1.msra.mxu0 %v101
    %117 = vmatprep.subr.mxu0 %v104
    %118 = vmatpush1.msra.mxu0 %v103
    %119 = vmatprep.subr.mxu0 0.0
    %120 = vmatpush1.msra.mxu0 0.0
    %121 = vmatprep.subr.mxu0 0.0
    %122 = vmatpush1.msra.mxu0 0.0
    %123 = vmatprep.subr.mxu0 0.0
    %124 = vmatpush1.msra.mxu0 0.0
    %125 = vmatprep.subr.mxu0 0.0
    %126 = vmatpush1.msra.mxu0 0.0
    %127 = vmatprep.subr.mxu0 0.0
    %128 = vmatpush1.msra.mxu0 0.0
    %129 = vmatprep.subr.mxu0 0.0
    %130 = vmatpush1.msra.mxu0 0.0
    %131 = vmatprep.subr.mxu0 0.0
    %132 = vmatpush1.msra.mxu0 0.0
    %133 = vmatprep.subr.mxu0 0.0
    %134 = vmatpush1.msra.mxu0 0.0
    %135 = vmatprep.subr.mxu0 0.0
    %136 = vmatpush1.msra.mxu0 0.0
    %137 = vmatprep.subr.mxu0 0.0
    %138 = vmatpush1.msra.mxu0 0.0
    %139 = vmatprep.subr.mxu0 0.0
    %140 = vmatpush1.msra.mxu0 0.0
    %141 = vmatprep.subr.mxu0 0.0
    %142 = vmatpush1.msra.mxu0 0.0
    %143 = vmatprep.subr.mxu0 0.0
    %144 = vmatpush1.msra.mxu0 0.0
    %145 = vmatprep.subr.mxu0 0.0
    %146 = vmatpush1.msra.mxu0 0.0
    %147 = vmatprep.subr.mxu0 0.0
    %148 = vmatpush1.msra.mxu0 0.0
    %149 = vmatprep.subr.mxu0 0.0
    %150 = vmatpush1.msra.mxu0 0.0
    %151 = vmatprep.subr.mxu0 0.0
    %152 = vmatpush1.msra.mxu0 0.0
    %153 = vmatprep.subr.mxu0 0.0
    %154 = vmatpush1.msra.mxu0 0.0
    %155 = vmatprep.subr.mxu0 0.0
    %156 = vmatpush1.msra.mxu0 0.0
    %157 = vmatprep.subr.mxu0 0.0
    %158 = vmatpush1.msra.mxu0 0.0
    %159 = vmatprep.subr.mxu0 0.0
    %160 = vmatpush1.msra.mxu0 0.0
    %161 = vmatprep.subr.mxu0 0.0
    %162 = vmatpush1.msra.mxu0 0.0
    %163 = vmatprep.subr.mxu0 0.0
    %164 = vmatpush1.msra.mxu0 0.0
    %165 = vmatprep.subr.mxu0 0.0
    %166 = vmatpush1.msra.mxu0 0.0
    %167 = vmatprep.subr.mxu0 0.0
    %168 = vmatpush1.msra.mxu0 0.0
    %169 = vmatprep.subr.mxu0 0.0
    %170 = vmatpush1.msra.mxu0 0.0
    %171 = vmatprep.subr.mxu0 0.0
    %172 = vmatpush1.msra.mxu0 0.0
    %173 = vmatprep.subr.mxu0 0.0
    %174 = vmatpush1.msra.mxu0 0.0
    %175 = vmatprep.mubr.f32.mxu0 0.0
    %176 = vmatmul.mubr.f32.gmra.mrb[0].mxu0 %v106
    %v177 = vpop.f32.mrb[0].mxu0
    %v178 = vadd.f32 0.0, %v177
    %v179 = vpop.f32.mrb[0].mxu0
    %v180 = vadd.f32 0.0, %v179
    %181 = vmatprep.mubr.f32.mxu0 0.0
    %182 = vmatmul.mubr.f32.gmra.mrb[0].mxu0 %v109
    %v183 = vpop.f32.mrb[0].mxu0
    %v184 = vadd.f32 0.0, %v183
    %v185 = vpop.f32.mrb[0].mxu0
    %v186 = vadd.f32 0.0, %v185
    %187 = vdwg.mxu0
    %v188 = vld [vmem:[#allocation2] sm:$0xff]
    %v189 = vld [vmem:[#allocation2 + $0x8] sm:$0xff]
    %v190 = vmul.f32 %v178, %v188
    %v191 = vmul.f32 %v184, %v189
    %v192 = vld [vmem:[#allocation5] sm:$0xff]
    %v193 = vld [vmem:[#allocation5 + $0x8] sm:$0xff]
    %196 = vrot.lane.b32.xlu0 %v192, 32
    %v197 = vpop.permute.xlu0 %196
    %198 = vrot.lane.b32.xlu0 %v193, 32
    %v199 = vpop.permute.xlu0 %198
    %v202 = vmul.f32 %v178, %v197
    %v203 = vmul.f32 %v184, %v199
    %206 = vrot.lane.b32.xlu0 %v190, 112
    %v207 = vpop.permute.xlu0 %206
    %208 = vrot.lane.b32.xlu0 %v191, 112
    %v209 = vpop.permute.xlu0 %208
    %212 = vrot.lane.b32.xlu0 %v202, 96
    %v213 = vpop.permute.xlu0 %212
    %214 = vrot.lane.b32.xlu0 %v203, 96
    %v215 = vpop.permute.xlu0 %214
    %vm216 = vcmask 130048
    %v217 = vsel %vm216, %v190, 0
    %v219 = vsel %vm216, %v191, 0
    %v221 = vsel %vm216, %v207, 0
    %v223 = vsel %vm216, %v209, 0
    %v225 = vsel %vm216, %v213, 0
    %v227 = vsel %vm216, %v215, 0
    %229 = vmatprep.subr.mxu0 0.0
    %230 = vmatpush1.xpose.msra.mxu0 %v225
    %231 = vmatprep.subr.mxu0 0.0
    %232 = vmatpush1.xpose.msra.mxu0 %v227
    %233 = vmatprep.subr.mxu0 0.0
    %234 = vmatpush1.xpose.msra.mxu0 0.0
    %235 = vmatprep.subr.mxu0 0.0
    %236 = vmatpush1.xpose.msra.mxu0 0.0
    %237 = vmatprep.subr.mxu0 0.0
    %238 = vmatpush1.xpose.msra.mxu0 0.0
    %239 = vmatprep.subr.mxu0 0.0
    %240 = vmatpush1.xpose.msra.mxu0 0.0
    %241 = vmatprep.subr.mxu0 0.0
    %242 = vmatpush1.xpose.msra.mxu0 0.0
    %243 = vmatprep.subr.mxu0 0.0
    %244 = vmatpush1.xpose.msra.mxu0 0.0
    %245 = vmatprep.subr.mxu0 0.0
    %246 = vmatpush1.xpose.msra.mxu0 0.0
    %247 = vmatprep.subr.mxu0 0.0
    %248 = vmatpush1.xpose.msra.mxu0 0.0
    %249 = vmatprep.subr.mxu0 0.0
    %250 = vmatpush1.xpose.msra.mxu0 0.0
    %251 = vmatprep.subr.mxu0 0.0
    %252 = vmatpush1.xpose.msra.mxu0 0.0
    %253 = vmatprep.subr.mxu0 0.0
    %254 = vmatpush1.xpose.msra.mxu0 0.0
    %255 = vmatprep.subr.mxu0 0.0
    %256 = vmatpush1.xpose.msra.mxu0 0.0
    %257 = vmatprep.subr.mxu0 0.0
    %258 = vmatpush1.xpose.msra.mxu0 0.0
    %259 = vmatprep.subr.mxu0 0.0
    %260 = vmatpush1.xpose.msra.mxu0 0.0
    %261 = vmatprep.subr.mxu0 0.0
    %262 = vmatpush1.xpose.msra.mxu0 0.0
    %263 = vmatprep.subr.mxu0 0.0
    %264 = vmatpush1.xpose.msra.mxu0 0.0
    %265 = vmatprep.subr.mxu0 0.0
    %266 = vmatpush1.xpose.msra.mxu0 0.0
    %267 = vmatprep.subr.mxu0 0.0
    %268 = vmatpush1.xpose.msra.mxu0 0.0
    %269 = vmatprep.subr.mxu0 0.0
    %270 = vmatpush1.xpose.msra.mxu0 0.0
    %271 = vmatprep.subr.mxu0 0.0
    %272 = vmatpush1.xpose.msra.mxu0 0.0
    %273 = vmatprep.subr.mxu0 0.0
    %274 = vmatpush1.xpose.msra.mxu0 0.0
    %275 = vmatprep.subr.mxu0 0.0
    %276 = vmatpush1.xpose.msra.mxu0 0.0
    %277 = vmatprep.subr.mxu0 0.0
    %278 = vmatpush1.xpose.msra.mxu0 0.0
    %279 = vmatprep.subr.mxu0 0.0
    %280 = vmatpush1.xpose.msra.mxu0 0.0
    %281 = vmatprep.subr.mxu0 0.0
    %282 = vmatpush1.xpose.msra.mxu0 0.0
    %283 = vmatprep.subr.mxu0 0.0
    %284 = vmatpush1.xpose.msra.mxu0 0.0
    %285 = vmatprep.subr.mxu0 0.0
    %286 = vmatpush1.xpose.msra.mxu0 0.0
    %287 = vmatprep.subr.mxu0 0.0
    %288 = vmatpush1.xpose.msra.mxu0 0.0
    %289 = vmatprep.subr.mxu0 0.0
    %290 = vmatpush1.xpose.msra.mxu0 0.0
    %291 = vmatprep.subr.mxu0 0.0
    %292 = vmatpush1.xpose.msra.mxu0 0.0
    %293 = vmatprep.mubr.f32.mxu0 0.0
    %294 = vmatmul.mubr.f32.gmra.mrb[0].mxu0 %v217
    %v295 = vpop.f32.mrb[0].mxu0
    %v296 = vadd.f32 0.0, %v295
    %v297 = vpop.f32.mrb[0].mxu0
    %298 = vmatprep.mubr.f32.mxu0 0.0
    %299 = vmatmul.mubr.f32.gmra.mrb[0].mxu0 %v219
    %v300 = vpop.f32.mrb[0].mxu0
    %v301 = vadd.f32 0.0, %v300
    %v302 = vpop.f32.mrb[0].mxu0
    %303 = vmatprep.mubr.f32.mxu0 0.0
    %304 = vmatmul.mubr.f32.gmra.mrb[0].mxu0 %v221
    %v305 = vpop.f32.mrb[0].mxu0
    %v306 = vadd.f32 0.0, %v305
    %v307 = vpop.f32.mrb[0].mxu0
    %308 = vmatprep.mubr.f32.mxu0 0.0
    %309 = vmatmul.mubr.f32.gmra.mrb[0].mxu0 %v223
    %v310 = vpop.f32.mrb[0].mxu0
    %v311 = vadd.f32 0.0, %v310
    %v312 = vpop.f32.mrb[0].mxu0
    %313 = vdwg.mxu0
    %v314 = vmul.f32 %v296, 0.25
    %v315 = vmul.f32 %v301, 0.25
    %v316 = vmul.f32 %v306, 0.25
    %v317 = vmul.f32 %v311, 0.25
    %v318 = vld [vmem:[%s7] sm:$0xff]
    %v319 = vld [vmem:[%s7 + $0x8] sm:$0xff]
    %v320 = vld [vmem:[%s7 + $0x10] sm:$0xff]
    %v321 = vld [vmem:[%s7 + $0x18] sm:$0xff]
    %v322 = vadd.f32 %v314, %v318
    %v323 = vadd.f32 %v315, %v319
    %v324 = vadd.f32 %v316, %v320
    %v325 = vadd.f32 %v317, %v321
    %v326 = vsel %vm216, %v322, -inf
    %327 = vmax.xlane.f32.xlu0 %v326
    %v328 = vpop.xlane.xlu0 %327
    %v329 = vsel %vm216, %v323, -inf
    %330 = vmax.xlane.f32.xlu0 %v329
    %v331 = vpop.xlane.xlu0 %330
    %v332 = vsel %vm216, %v324, -inf
    %333 = vmax.xlane.f32.xlu0 %v332
    %v334 = vpop.xlane.xlu0 %333
    %v335 = vsel %vm216, %v325, -inf
    %336 = vmax.xlane.f32.xlu0 %v335
    %v337 = vpop.xlane.xlu0 %336
    %v338 = vsub.f32 %v322, %v328
    %v339 = vsub.f32 %v323, %v331
    %v340 = vsub.f32 %v324, %v334
    %v341 = vsub.f32 %v325, %v337
    %v342 = vmul.f32 %v338, 1.442695
    %v343 = vpow.pop %v342
    %v344 = vmul.f32 %v339, 1.442695
    %v345 = vpow.pop %v344
    %v346 = vmul.f32 %v340, 1.442695
    %v347 = vpow.pop %v346
    %v348 = vmul.f32 %v341, 1.442695
    %v349 = vpow.pop %v348
    %v350 = vsel %vm216, %v343, 0.0
    %351 = vadd.xlane.f32.xlu0 %v350
    %v352 = vpop.xlane.xlu0 %351
    %v353 = vsel %vm216, %v345, 0.0
    %354 = vadd.xlane.f32.xlu0 %v353
    %v355 = vpop.xlane.xlu0 %354
    %v356 = vsel %vm216, %v347, 0.0
    %357 = vadd.xlane.f32.xlu0 %v356
    %v358 = vpop.xlane.xlu0 %357
    %v359 = vsel %vm216, %v349, 0.0
    %360 = vadd.xlane.f32.xlu0 %v359
    %v361 = vpop.xlane.xlu0 %360
    %v362 = vrcp.pop %v352
    %v363 = vrcp.pop %v355
    %v364 = vrcp.pop %v358
    %v365 = vrcp.pop %v361
    %v366 = vmul.f32 %v343, %v362
    %v367 = vmul.f32 %v345, %v363
    %v368 = vmul.f32 %v347, %v364
    %v369 = vmul.f32 %v349, %v365
    %372 = vrot.lane.b32.xlu0 %v178, 80
    %v373 = vpop.permute.xlu0 %372
    %374 = vrot.lane.b32.xlu0 %v184, 80
    %v375 = vpop.permute.xlu0 %374
    %v379 = vsel %vm216, %v366, 0
    %v382 = vsel %vm216, %v367, 0
    %v385 = vsel %vm216, %v368, 0
    %v388 = vsel %vm216, %v369, 0
    %390 = vmatprep.subr.mxu0 0.0
    %391 = vmatpush1.msra.mxu0 %v373
    %392 = vmatprep.subr.mxu0 0.0
    %393 = vmatpush1.msra.mxu0 %v375
    %394 = vmatprep.subr.mxu0 0.0
    %395 = vmatpush1.msra.mxu0 0.0
    %396 = vmatprep.subr.mxu0 0.0
    %397 = vmatpush1.msra.mxu0 0.0
    %398 = vmatprep.subr.mxu0 0.0
    %399 = vmatpush1.msra.mxu0 0.0
    %400 = vmatprep.subr.mxu0 0.0
    %401 = vmatpush1.msra.mxu0 0.0
    %402 = vmatprep.subr.mxu0 0.0
    %403 = vmatpush1.msra.mxu0 0.0
    %404 = vmatprep.subr.mxu0 0.0
    %405 = vmatpush1.msra.mxu0 0.0
    %406 = vmatprep.subr.mxu0 0.0
    %407 = vmatpush1.msra.mxu0 0.0
    %408 = vmatprep.subr.mxu0 0.0
    %409 = vmatpush1.msra.mxu0 0.0
    %410 = vmatprep.subr.mxu0 0.0
    %411 = vmatpush1.msra.mxu0 0.0
    %412 = vmatprep.subr.mxu0 0.0
    %413 = vmatpush1.msra.mxu0 0.0
    %414 = vmatprep.subr.mxu0 0.0
    %415 = vmatpush1.msra.mxu0 0.0
    %416 = vmatprep.subr.mxu0 0.0
    %417 = vmatpush1.msra.mxu0 0.0
    %418 = vmatprep.subr.mxu0 0.0
    %419 = vmatpush1.msra.mxu0 0.0
    %420 = vmatprep.subr.mxu0 0.0
    %421 = vmatpush1.msra.mxu0 0.0
    %422 = vmatprep.subr.mxu0 0.0
    %423 = vmatpush1.msra.mxu0 0.0
    %424 = vmatprep.subr.mxu0 0.0
    %425 = vmatpush1.msra.mxu0 0.0
    %426 = vmatprep.subr.mxu0 0.0
    %427 = vmatpush1.msra.mxu0 0.0
    %428 = vmatprep.subr.mxu0 0.0
    %429 = vmatpush1.msra.mxu0 0.0
    %430 = vmatprep.subr.mxu0 0.0
    %431 = vmatpush1.msra.mxu0 0.0
    %432 = vmatprep.subr.mxu0 0.0
    %433 = vmatpush1.msra.mxu0 0.0
    %434 = vmatprep.subr.mxu0 0.0
    %435 = vmatpush1.msra.mxu0 0.0
    %436 = vmatprep.subr.mxu0 0.0
    %437 = vmatpush1.msra.mxu0 0.0
    %438 = vmatprep.subr.mxu0 0.0
    %439 = vmatpush1.msra.mxu0 0.0
    %440 = vmatprep.subr.mxu0 0.0
    %441 = vmatpush1.msra.mxu0 0.0
    %442 = vmatprep.subr.mxu0 0.0
    %443 = vmatpush1.msra.mxu0 0.0
    %444 = vmatprep.subr.mxu0 0.0
    %445 = vmatpush1.msra.mxu0 0.0
    %446 = vmatprep.subr.mxu0 0.0
    %447 = vmatpush1.msra.mxu0 0.0
    %448 = vmatprep.subr.mxu0 0.0
    %449 = vmatpush1.msra.mxu0 0.0
    %450 = vmatprep.subr.mxu0 0.0
    %451 = vmatpush1.msra.mxu0 0.0
    %452 = vmatprep.subr.mxu0 0.0
    %453 = vmatpush1.msra.mxu0 0.0
    %454 = vmatprep.mubr.f32.mxu0 0.0
    %455 = vmatmul.mubr.f32.gmra.mrb[0].mxu0 %v379
    %v456 = vpop.f32.mrb[0].mxu0
    %v457 = vadd.f32 0.0, %v456
    %v458 = vpop.f32.mrb[0].mxu0
    %459 = vmatprep.mubr.f32.mxu0 0.0
    %460 = vmatmul.mubr.f32.gmra.mrb[0].mxu0 %v382
    %v461 = vpop.f32.mrb[0].mxu0
    %v462 = vadd.f32 0.0, %v461
    %v463 = vpop.f32.mrb[0].mxu0
    %464 = vmatprep.mubr.f32.mxu0 0.0
    %465 = vmatmul.mubr.f32.gmra.mrb[0].mxu0 %v385
    %v466 = vpop.f32.mrb[0].mxu0
    %v467 = vadd.f32 0.0, %v466
    %v468 = vpop.f32.mrb[0].mxu0
    %469 = vmatprep.mubr.f32.mxu0 0.0
    %470 = vmatmul.mubr.f32.gmra.mrb[0].mxu0 %v388
    %v471 = vpop.f32.mrb[0].mxu0
    %v472 = vadd.f32 0.0, %v471
    %v473 = vpop.f32.mrb[0].mxu0
    %474 = vdwg.mxu0
    %477 = vrot.lane.b32.xlu0 %v467, 16
    %v478 = vpop.permute.xlu0 %477
    %479 = vrot.lane.b32.xlu0 %v472, 16
    %v480 = vpop.permute.xlu0 %479
    %v483 = vsel %vm216, %v457, %v478
    %v484 = vsel %vm216, %v462, %v480
    %v485 = vld [vmem:[%s3] sm:$0xff]
    %v486 = vld [vmem:[%s3 + $0x8] sm:$0xff]
    %v487 = vld [vmem:[%s3 + $0x10] sm:$0xff]
    %v488 = vld [vmem:[%s3 + $0x18] sm:$0xff]
    %v489 = vxor.u32 %v180, 2147483648
    %v490 = vxor.u32 %v186, 2147483648
    %v491 = vmul.f32 %v489, 1.442695
    %v492 = vpow.pop %v491
    %v493 = vmul.f32 %v490, 1.442695
    %v494 = vpow.pop %v493
    %v495 = vadd.f32 %v492, 1.0
    %v496 = vadd.f32 %v494, 1.0
    %v497 = vrcp.pop %v495
    %v498 = vmul.f32 1.0, %v497
    %v499 = vrcp.pop %v496
    %v500 = vmul.f32 1.0, %v499
    %v501 = vmul.f32 %v180, %v498
    %v502 = vmul.f32 %v186, %v500
    %503 = vrot.lane.b32.xlu0 %v178, 64
    %v504 = vpop.permute.xlu0 %503
    %505 = vrot.lane.b32.xlu0 %v184, 64
    %v506 = vpop.permute.xlu0 %505
    %v509 = vmul.f32 %v501, %v504
    %v510 = vmul.f32 %v502, %v506
    %v511 = vld [vmem:[%s4] sm:$0xff]
    %v512 = vld [vmem:[%s4 + $0x8] sm:$0xff]
    %v513 = vld [vmem:[%s4 + $0x10] sm:$0xff]
    %v514 = vld [vmem:[%s4 + $0x18] sm:$0xff]
    %v515 = vld [vmem:[%s4 + $0x20] sm:$0xff]
    %v516 = vld [vmem:[%s4 + $0x28] sm:$0xff]
    %v517 = vld [vmem:[%s4 + $0x30] sm:$0xff]
    %v518 = vld [vmem:[%s4 + $0x38] sm:$0xff]
    %vm519 = vcmask 523264
    %v521 = vsel %vm519, %v509, 0
    %v524 = vsel %vm519, %v510, 0
    %526 = vmatprep.subr.mxu0 0.0
    %527 = vmatpush1.msra.mxu0 %v511
    %528 = vmatprep.subr.mxu0 0.0
    %529 = vmatpush1.msra.mxu0 %v512
    %530 = vmatprep.subr.mxu0 0.0
    %531 = vmatpush1.msra.mxu0 %v513
    %532 = vmatprep.subr.mxu0 0.0
    %533 = vmatpush1.msra.mxu0 %v514
    %534 = vmatprep.subr.mxu0 0.0
    %535 = vmatpush1.msra.mxu0 %v515
    %536 = vmatprep.subr.mxu0 0.0
    %537 = vmatpush1.msra.mxu0 %v516
    %538 = vmatprep.subr.mxu0 0.0
    %539 = vmatpush1.msra.mxu0 %v517
    %540 = vmatprep.subr.mxu0 0.0
    %541 = vmatpush1.msra.mxu0 %v518
    %542 = vmatprep.subr.mxu0 0.0
    %543 = vmatpush1.msra.mxu0 0.0
    %544 = vmatprep.subr.mxu0 0.0
    %545 = vmatpush1.msra.mxu0 0.0
    %546 = vmatprep.subr.mxu0 0.0
    %547 = vmatpush1.msra.mxu0 0.0
    %548 = vmatprep.subr.mxu0 0.0
    %549 = vmatpush1.msra.mxu0 0.0
    %550 = vmatprep.subr.mxu0 0.0
    %551 = vmatpush1.msra.mxu0 0.0
    %552 = vmatprep.subr.mxu0 0.0
    %553 = vmatpush1.msra.mxu0 0.0
    %554 = vmatprep.subr.mxu0 0.0
    %555 = vmatpush1.msra.mxu0 0.0
    %556 = vmatprep.subr.mxu0 0.0
    %557 = vmatpush1.msra.mxu0 0.0
    %558 = vmatprep.subr.mxu0 0.0
    %559 = vmatpush1.msra.mxu0 0.0
    %560 = vmatprep.subr.mxu0 0.0
    %561 = vmatpush1.msra.mxu0 0.0
    %562 = vmatprep.subr.mxu0 0.0
    %563 = vmatpush1.msra.mxu0 0.0
    %564 = vmatprep.subr.mxu0 0.0
    %565 = vmatpush1.msra.mxu0 0.0
    %566 = vmatprep.subr.mxu0 0.0
    %567 = vmatpush1.msra.mxu0 0.0
    %568 = vmatprep.subr.mxu0 0.0
    %569 = vmatpush1.msra.mxu0 0.0
    %570 = vmatprep.subr.mxu0 0.0
    %571 = vmatpush1.msra.mxu0 0.0
    %572 = vmatprep.subr.mxu0 0.0
    %573 = vmatpush1.msra.mxu0 0.0
    %574 = vmatprep.subr.mxu0 0.0
    %575 = vmatpush1.msra.mxu0 0.0
    %576 = vmatprep.subr.mxu0 0.0
    %577 = vmatpush1.msra.mxu0 0.0
    %578 = vmatprep.subr.mxu0 0.0
    %579 = vmatpush1.msra.mxu0 0.0
    %580 = vmatprep.subr.mxu0 0.0
    %581 = vmatpush1.msra.mxu0 0.0
    %582 = vmatprep.subr.mxu0 0.0
    %583 = vmatpush1.msra.mxu0 0.0
    %584 = vmatprep.subr.mxu0 0.0
    %585 = vmatpush1.msra.mxu0 0.0
    %586 = vmatprep.subr.mxu0 0.0
    %587 = vmatpush1.msra.mxu0 0.0
    %588 = vmatprep.subr.mxu0 0.0
    %589 = vmatpush1.msra.mxu0 0.0
    %590 = vmatprep.mubr.f32.mxu0 0.0
    %591 = vmatmul.mubr.f32.gmra.mrb[0].mxu0 %v521
    %v592 = vpop.f32.mrb[0].mxu0
    %v593 = vadd.f32 0.0, %v592
    %v594 = vpop.f32.mrb[0].mxu0
    %595 = vmatprep.mubr.f32.mxu0 0.0
    %596 = vmatmul.mubr.f32.gmra.mrb[0].mxu0 %v524
    %v597 = vpop.f32.mrb[0].mxu0
    %v598 = vadd.f32 0.0, %v597
    %v599 = vpop.f32.mrb[0].mxu0
    %600 = vdwg.mxu0
    %v602 = vsel %vm60, %v483, 0
    %v605 = vsel %vm60, %v484, 0
    %607 = vmatprep.subr.mxu0 0.0
    %608 = vmatpush1.msra.mxu0 %v485
    %609 = vmatprep.subr.mxu0 0.0
    %610 = vmatpush1.msra.mxu0 %v486
    %611 = vmatprep.subr.mxu0 0.0
    %612 = vmatpush1.msra.mxu0 %v487
    %613 = vmatprep.subr.mxu0 0.0
    %614 = vmatpush1.msra.mxu0 %v488
    %615 = vmatprep.subr.mxu0 0.0
    %616 = vmatpush1.msra.mxu0 0.0
    %617 = vmatprep.subr.mxu0 0.0
    %618 = vmatpush1.msra.mxu0 0.0
    %619 = vmatprep.subr.mxu0 0.0
    %620 = vmatpush1.msra.mxu0 0.0
    %621 = vmatprep.subr.mxu0 0.0
    %622 = vmatpush1.msra.mxu0 0.0
    %623 = vmatprep.subr.mxu0 0.0
    %624 = vmatpush1.msra.mxu0 0.0
    %625 = vmatprep.subr.mxu0 0.0
    %626 = vmatpush1.msra.mxu0 0.0
    %627 = vmatprep.subr.mxu0 0.0
    %628 = vmatpush1.msra.mxu0 0.0
    %629 = vmatprep.subr.mxu0 0.0
    %630 = vmatpush1.msra.mxu0 0.0
    %631 = vmatprep.subr.mxu0 0.0
    %632 = vmatpush1.msra.mxu0 0.0
    %633 = vmatprep.subr.mxu0 0.0
    %634 = vmatpush1.msra.mxu0 0.0
    %635 = vmatprep.subr.mxu0 0.0
    %636 = vmatpush1.msra.mxu0 0.0
    %637 = vmatprep.subr.mxu0 0.0
    %638 = vmatpush1.msra.mxu0 0.0
    %639 = vmatprep.subr.mxu0 0.0
    %640 = vmatpush1.msra.mxu0 0.0
    %641 = vmatprep.subr.mxu0 0.0
    %642 = vmatpush1.msra.mxu0 0.0
    %643 = vmatprep.subr.mxu0 0.0
    %644 = vmatpush1.msra.mxu0 0.0
    %645 = vmatprep.subr.mxu0 0.0
    %646 = vmatpush1.msra.mxu0 0.0
    %647 = vmatprep.subr.mxu0 0.0
    %648 = vmatpush1.msra.mxu0 0.0
    %649 = vmatprep.subr.mxu0 0.0
    %650 = vmatpush1.msra.mxu0 0.0
    %651 = vmatprep.subr.mxu0 0.0
    %652 = vmatpush1.msra.mxu0 0.0
    %653 = vmatprep.subr.mxu0 0.0
    %654 = vmatpush1.msra.mxu0 0.0
    %655 = vmatprep.subr.mxu0 0.0
    %656 = vmatpush1.msra.mxu0 0.0
    %657 = vmatprep.subr.mxu0 0.0
    %658 = vmatpush1.msra.mxu0 0.0
    %659 = vmatprep.subr.mxu0 0.0
    %660 = vmatpush1.msra.mxu0 0.0
    %661 = vmatprep.subr.mxu0 0.0
    %662 = vmatpush1.msra.mxu0 0.0
    %663 = vmatprep.subr.mxu0 0.0
    %664 = vmatpush1.msra.mxu0 0.0
    %665 = vmatprep.subr.mxu0 0.0
    %666 = vmatpush1.msra.mxu0 0.0
    %667 = vmatprep.subr.mxu0 0.0
    %668 = vmatpush1.msra.mxu0 0.0
    %669 = vmatprep.subr.mxu0 0.0
    %670 = vmatpush1.msra.mxu0 0.0
    %671 = vmatprep.mubr.f32.mxu0 0.0
    %672 = vmatmul.mubr.f32.gmra.mrb[0].mxu0 %v602
    %v673 = vpop.f32.mrb[0].mxu0
    %v674 = vadd.f32 %v593, %v673
    %v675 = vpop.f32.mrb[0].mxu0
    %676 = vmatprep.mubr.f32.mxu0 0.0
    %677 = vmatmul.mubr.f32.gmra.mrb[0].mxu0 %v605
    %v678 = vpop.f32.mrb[0].mxu0
    %v679 = vadd.f32 %v598, %v678
    %v680 = vpop.f32.mrb[0].mxu0
    %681 = vdwg.mxu0
    %682 = vrot.lane.b32.xlu0 %v366, 32
    %v683 = vpop.permute.xlu0 %682
    %684 = vrot.lane.b32.xlu0 %v367, 32
    %v685 = vpop.permute.xlu0 %684
    %688 = vrot.lane.b32.xlu0 %v368, 48
    %v689 = vpop.permute.xlu0 %688
    %690 = vrot.lane.b32.xlu0 %v369, 48
    %v691 = vpop.permute.xlu0 %690
    %v694 = vsel %vm60, %v674, %v683
    %v695 = vsel %vm60, %v679, %v685
    %vm696 = vcmask 392192
    %v697 = vsel %vm696, %v694, %v689
    %v698 = vsel %vm696, %v695, %v691
    %699 = vst.msk [vmem:[#allocation7] sm:$0xff] %vm519, %v697
    %700 = vst.msk [vmem:[#allocation7 + $0x8] sm:$0xff] %vm519, %v698
    // Predicated region
    $region42: #{tpu_custom_call.1} parent=1 // pred_check
      _
    $region43: #{tpu_custom_call.1} parent=1 // pred_check_branch
      %702 = sbr.rel (0) target = $region45
    $region44: #{tpu_custom_call.1} parent=1 // pred_region
      %s704 = ssub.s32 256, 256
      %705 = vsyncadd [#allocation4], %s704
      %s706 = sshll.u32 [#allocation7], 4
      %s707 = int_to_ptr.vmem [resolvable:$true] %s706
      %712 = dma.vmem_to_hbm [thread:$0]  %s707, 256, %s8, [#allocation4], 128, 128, 8
    $region45: #{tpu_custom_call.1} parent=1 // pred_fallthru
      _
    // Predicated region
    $region46: #{tpu_custom_call.1} parent=1 // pred_check
      _
    $region47: #{tpu_custom_call.1} parent=1 // pred_check_branch
      %714 = sbr.rel (0) target = $region49
    $region48: #{tpu_custom_call.1} parent=1 // pred_region
      %715 = dma.done [#allocation4], 256
    $region49: #{tpu_custom_call.1} parent=1 // pred_fallthru
      _
    %716 = vsyncpa [#allocation3], 1
    %717 = vsyncpa [#allocation6], 1
    %718 = vsyncpa [#allocation4], 1

</llo_original>
